<compile_context>
chip_gen: v6e
topology: v6e:2x2x1
jax: 0.10.0
libtpu: 0.0.40
codegen_flags: <defaults>
</compile_context>

<pallas_src>
import functools

import jax
import jax.numpy as jnp
from jax.experimental import pallas as pl
from jax.experimental.pallas import tpu as pltpu


def _round_up(n, m):
    return ((n + m - 1) // m) * m


def _mlp_kernel(x_ref, w1_ref, b1_ref, w2t_ref, b2t_ref, o_ref):
    # x:   [TB, F]  (compute dtype, e.g. bf16)
    # w1:  [F, H]   (compute dtype)      b1:  [1, H]  f32
    # w2t: [O, H]   (compute dtype)      b2t: [O, 1]  f32
    # o:   [O, TB]  f32   (transposed -> lane-dense, unmasked stores)
    x = x_ref[...]
    h = jnp.dot(x, w1_ref[...], preferred_element_type=jnp.float32) + b1_ref[...]
    h = jnp.maximum(h, 0.0)                       # ReLU on the VPU (f32)
    h = h.astype(w2t_ref.dtype)
    # out_t[o, b] = sum_h w2t[o, h] * h[b, h]  -> [O, TB] directly off the MXU.
    out_t = jax.lax.dot_general(
        w2t_ref[...], h,
        dimension_numbers=(((1,), (1,)), ((), ())),
        preferred_element_type=jnp.float32,
    ) + b2t_ref[...]
    o_ref[...] = out_t.astype(o_ref.dtype)


def oracle_forward(x, w1, b1, w2, b2, *, tile_b=None, compute_dtype=jnp.bfloat16):
    """Pallas TPU implementation of Oracle.forward (UCIModel MLP logits).

    x: [B, F]; w1: [F, H]; b1: [H]; w2: [H, O]; b2: [O].  Returns [B, O] f32.
    """
    B, F = x.shape
    H = w1.shape[1]
    O = w2.shape[1]

    # ---- pick a batch tile ---------------------------------------------------
    # Default 1024 rows/tile (multiple of 8 and 128): 1024 x 32 x 2B (bf16)
    # = 64 KiB per x tile (~128 KiB double-buffered) -> trivially fits VMEM on
    # v5e/v6e/v7x while amortizing the ~0.35 us per-grid-step overhead.
    if tile_b is None:
        tile_b = 1024
    tile_b = max(8, _round_up(int(tile_b), 8))
    if tile_b >= B:
        tile_b = _round_up(B, 8)          # single tile covering the padded batch
    else:
        tile_b = _round_up(tile_b, 128)   # multi-tile: keep the [O, tile_b] store lane-dense
    b_pad = _round_up(B, tile_b)

    if b_pad != B:
        x = jnp.pad(x, ((0, b_pad - B), (0, 0)))  # padded rows sliced off below

    # ---- wrapper-side casts / layout plumbing --------------------------------
    x_c = x.astype(compute_dtype)                     # halves the dominant HBM stream
    w1_c = w1.astype(compute_dtype)                   # [F, H]
    w2t_c = jnp.transpose(w2).astype(compute_dtype)   # [O, H]
    b1_2d = jnp.reshape(b1, (1, H)).astype(jnp.float32)
    b2t = jnp.reshape(b2, (O, 1)).astype(jnp.float32)

    itemsize = jnp.dtype(compute_dtype).itemsize
    cost = pl.CostEstimate(
        flops=2 * b_pad * F * H + 2 * b_pad * H * O,
        transcendentals=0,
        bytes_accessed=(b_pad * F * itemsize            # x stream
                        + F * H * itemsize + H * 4       # W1, b1
                        + O * H * itemsize + O * 4       # W2^T, b2
                        + O * b_pad * 4),                # output
    )

    grid = (b_pad // tile_b,)
    out_t = pl.pallas_call(
        _mlp_kernel,
        out_shape=jax.ShapeDtypeStruct((O, b_pad), jnp.float32),
        grid_spec=pltpu.PrefetchScalarGridSpec(
            num_scalar_prefetch=0,
            grid=grid,
            in_specs=[
                pl.BlockSpec((tile_b, F), lambda i: (i, 0)),   # x: streamed over batch
                pl.BlockSpec((F, H), lambda i: (0, 0)),        # W1: resident
                pl.BlockSpec((1, H), lambda i: (0, 0)),        # b1: resident
                pl.BlockSpec((O, H), lambda i: (0, 0)),        # W2^T: resident
                pl.BlockSpec((O, 1), lambda i: (0, 0)),        # b2^T: resident
            ],
            out_specs=pl.BlockSpec((O, tile_b), lambda i: (0, i)),  # lane-dense store
        ),
        compiler_params=pltpu.CompilerParams(
            dimension_semantics=("parallel",),     # batch axis: megacore-shardable
            vmem_limit_bytes=32 * 1024 * 1024,     # explicit; portable v5e/v6e/v7x
        ),
        cost_estimate=cost,
    )(x_c, w1_c, b1_2d, w2t_c, b2t)

    # Back to the module's [B, O] layout; drop padded rows.
    return jnp.transpose(out_t)[:B]


def init_uci_model_params(key, in_features, hidden, output_number):
    """Deterministic PyTorch nn.Linear-style init: U(-1/sqrt(fan_in), +1/sqrt(fan_in))."""
    k1, k2, k3, k4 = jax.random.split(key, 4)
    bound1 = 1.0 / jnp.sqrt(jnp.float32(in_features))
    bound2 = 1.0 / jnp.sqrt(jnp.float32(hidden))
    w1 = jax.random.uniform(k1, (in_features, hidden), jnp.float32, -bound1, bound1)
    b1 = jax.random.uniform(k2, (hidden,), jnp.float32, -bound1, bound1)
    w2 = jax.random.uniform(k3, (hidden, output_number), jnp.float32, -bound2, bound2)
    b2 = jax.random.uniform(k4, (output_number,), jnp.float32, -bound2, bound2)
    return w1, b1, w2, b2


def reference_forward(x, w1, b1, w2, b2, compute_dtype=jnp.float32):
    """Pure-JAX reference matching the kernel's precision policy."""
    f32 = jnp.float32
    xc = x.astype(compute_dtype).astype(f32)
    w1c = w1.astype(compute_dtype).astype(f32)
    w2c = w2.astype(compute_dtype).astype(f32)
    h = jnp.maximum(xc @ w1c + b1[None, :], 0.0)
    hc = h.astype(compute_dtype).astype(f32)
    return hc @ w2c + b2[None, :]


if __name__ == "__main__":
    # Shapes consistent with Oracle(in_features=32, output_number=4).
    in_features = 32
    hidden = 64
    output_number = 4

    key = jax.random.PRNGKey(0)
    kx, kp, kx2 = jax.random.split(key, 3)
    w1, b1, w2, b2 = init_uci_model_params(kp, in_features, hidden, output_number)

    # --- small demo batch (B=8), default bf16 compute path ---------------------
    x_small = jax.random.normal(kx, (8, in_features), dtype=jnp.float32)
    fwd_bf16 = jax.jit(functools.partial(oracle_forward, w1=w1, b1=b1, w2=w2, b2=b2))
    out_small = jax.block_until_ready(fwd_bf16(x_small))
    ref_small = reference_forward(x_small, w1, b1, w2, b2, compute_dtype=jnp.bfloat16)
    assert out_small.shape == (8, output_number)
    assert jnp.allclose(out_small, ref_small, atol=2e-3, rtol=2e-3)

    # --- f32 compute path (exact torch-module semantics) -----------------------
    fwd_f32 = jax.jit(functools.partial(oracle_forward, w1=w1, b1=b1, w2=w2, b2=b2,
                                        compute_dtype=jnp.float32))
    out_f32 = jax.block_until_ready(fwd_f32(x_small))
    ref_f32 = reference_forward(x_small, w1, b1, w2, b2, compute_dtype=jnp.float32)
    assert jnp.allclose(out_f32, ref_f32, atol=1e-4, rtol=1e-4)

    # --- ragged multi-tile batch: exercises padding + the 'parallel' grid ------
    x_big = jax.random.normal(kx2, (600, in_features), dtype=jnp.float32)
    fwd_tiled = jax.jit(functools.partial(oracle_forward, w1=w1, b1=b1, w2=w2, b2=b2,
                                          tile_b=128))
    out_big = jax.block_until_ready(fwd_tiled(x_big))
    ref_big = reference_forward(x_big, w1, b1, w2, b2, compute_dtype=jnp.bfloat16)
    assert out_big.shape == (600, output_number)
    assert jnp.allclose(out_big, ref_big, atol=2e-3, rtol=2e-3)

    # TODO(synk): Oracle.load_model / Oracle.predict are host-side utilities
    # (checkpoint loading, DataLoader iteration) with no kernel equivalent.
    print("KERNEL_OK")
</pallas_src>

<mosaic_0001>
module attributes {stable_mosaic.version = 11 : i64} {
  func.func @_mlp_kernel(%arg0: i32, %arg1: memref<8x32xbf16, #tpu.memory_space<vmem>>, %arg2: memref<32x64xbf16, #tpu.memory_space<vmem>>, %arg3: memref<1x64xf32, #tpu.memory_space<vmem>>, %arg4: memref<4x64xbf16, #tpu.memory_space<vmem>>, %arg5: memref<4x1xf32, #tpu.memory_space<vmem>>, %arg6: memref<4x8xf32, #tpu.memory_space<vmem>>) attributes {dimension_semantics = [#tpu.dimension_semantics<parallel>], iteration_bounds = array<i64: 1>, scalar_prefetch = 0 : i64, scratch_operands = 0 : i64, tpu.core_type = #tpu.core_type<tc>, window_params = [{transform_indices = @transform_0, window_bounds = array<i64: 8, 32>}, {pipeline_mode = #tpu.pipeline_mode<synchronous>, transform_indices = @transform_1, window_bounds = array<i64: 32, 64>}, {pipeline_mode = #tpu.pipeline_mode<synchronous>, transform_indices = @transform_2, window_bounds = array<i64: 1, 64>}, {pipeline_mode = #tpu.pipeline_mode<synchronous>, transform_indices = @transform_3, window_bounds = array<i64: 4, 64>}, {pipeline_mode = #tpu.pipeline_mode<synchronous>, transform_indices = @transform_4, window_bounds = array<i64: 4, 1>}, {transform_indices = @transform_5, window_bounds = array<i64: 4, 8>}]} {
    %c0 = arith.constant 0 : index
    %c0_0 = arith.constant 0 : index
    %0 = vector.load %arg1[%c0, %c0_0] : memref<8x32xbf16, #tpu.memory_space<vmem>>, vector<8x32xbf16>
    %c0_1 = arith.constant 0 : index
    %c0_2 = arith.constant 0 : index
    %1 = vector.load %arg2[%c0_1, %c0_2] : memref<32x64xbf16, #tpu.memory_space<vmem>>, vector<32x64xbf16>
    %cst = arith.constant dense<0.000000e+00> : vector<8x64xf32>
    %2 = tpu.matmul %0, %1, %cst {dimension_numbers = #tpu.dot_dimension_numbers<[1], [0], [0], [1], [0, 0, 1, 1], [], []>} : vector<8x32xbf16>, vector<32x64xbf16>, vector<8x64xf32> -> vector<8x64xf32>
    %c0_3 = arith.constant 0 : index
    %c0_4 = arith.constant 0 : index
    %3 = vector.load %arg3[%c0_3, %c0_4] : memref<1x64xf32, #tpu.memory_space<vmem>>, vector<1x64xf32>
    %4 = vector.broadcast %3 : vector<1x64xf32> to vector<8x64xf32>
    %5 = arith.addf %2, %4 : vector<8x64xf32>
    %cst_5 = arith.constant 0.000000e+00 : f32
    %6 = vector.broadcast %cst_5 : f32 to vector<8x64xf32>
    %7 = arith.maximumf %5, %6 : vector<8x64xf32>
    %8 = arith.truncf %7 : vector<8x64xf32> to vector<8x64xbf16>
    %c0_6 = arith.constant 0 : index
    %c0_7 = arith.constant 0 : index
    %9 = vector.load %arg4[%c0_6, %c0_7] : memref<4x64xbf16, #tpu.memory_space<vmem>>, vector<4x64xbf16>
    %cst_8 = arith.constant dense<0.000000e+00> : vector<4x8xf32>
    %10 = tpu.matmul %9, %8, %cst_8 {dimension_numbers = #tpu.dot_dimension_numbers<[1], [1], [0], [0], [0, 0, 1, 0], [], []>} : vector<4x64xbf16>, vector<8x64xbf16>, vector<4x8xf32> -> vector<4x8xf32>
    %c0_9 = arith.constant 0 : index
    %c0_10 = arith.constant 0 : index
    %11 = vector.load %arg5[%c0_9, %c0_10] : memref<4x1xf32, #tpu.memory_space<vmem>>, vector<4x1xf32>
    %12 = vector.broadcast %11 : vector<4x1xf32> to vector<4x8xf32>
    %13 = arith.addf %10, %12 : vector<4x8xf32>
    %c0_11 = arith.constant 0 : index
    %c0_12 = arith.constant 0 : index
    %14 = vector.load %arg6[%c0_11, %c0_12] : memref<4x8xf32, #tpu.memory_space<vmem>>, vector<4x8xf32>
    tpu.vector_store %arg6[%c0_11, %c0_12], %13 {strides = array<i32>} : memref<4x8xf32, #tpu.memory_space<vmem>>, vector<4x8xf32>,
    return
  }
  func.func @transform_0(%arg0: i32) -> (i32, i32) {
    %c0_i32 = arith.constant 0 : i32
    %c0_i32_0 = arith.constant 0 : i32
    return %arg0, %c0_i32 : i32, i32
  }
  func.func @transform_1(%arg0: i32) -> (i32, i32) {
    %c0_i32 = arith.constant 0 : i32
    %c0_i32_0 = arith.constant 0 : i32
    %c0_i32_1 = arith.constant 0 : i32
    return %c0_i32, %c0_i32_0 : i32, i32
  }
  func.func @transform_2(%arg0: i32) -> (i32, i32) {
    %c0_i32 = arith.constant 0 : i32
    %c0_i32_0 = arith.constant 0 : i32
    %c0_i32_1 = arith.constant 0 : i32
    return %c0_i32, %c0_i32_0 : i32, i32
  }
  func.func @transform_3(%arg0: i32) -> (i32, i32) {
    %c0_i32 = arith.constant 0 : i32
    %c0_i32_0 = arith.constant 0 : i32
    %c0_i32_1 = arith.constant 0 : i32
    return %c0_i32, %c0_i32_0 : i32, i32
  }
  func.func @transform_4(%arg0: i32) -> (i32, i32) {
    %c0_i32 = arith.constant 0 : i32
    %c0_i32_0 = arith.constant 0 : i32
    %c0_i32_1 = arith.constant 0 : i32
    return %c0_i32, %c0_i32_0 : i32, i32
  }
  func.func @transform_5(%arg0: i32) -> (i32, i32) {
    %c0_i32 = arith.constant 0 : i32
    %c0_i32_0 = arith.constant 0 : i32
    return %c0_i32, %arg0 : i32, i32
  }
}

</mosaic_0001>

<llo_original>
// kernel: oracle_forward.1
$region0: #{oracle_forward.1}
  #allocation0 [shape = 'u32[]', space=smem, size = 0x4, offset = 0x4, fixed_abs, tag = 'smem constant byte address 0x4 - core index']
  #allocation1 [shape = 'u32[144,128]{1,0:T(1,128)}', space=vmem, size = 0x12000, scoped, tag = 'internal scratch']
  %s0 = inlined_call_operand.vmem [shape: bf16[8,32], index: 0, kind: input, shape index: {}]
  %s1 = inlined_call_operand.vmem [shape: bf16[32,64], index: 1, kind: input, shape index: {}]
  %s2 = inlined_call_operand.vmem [shape: f32[1,64], index: 2, kind: input, shape index: {}]
  %s3 = inlined_call_operand.vmem [shape: bf16[4,64], index: 3, kind: input, shape index: {}]
  %s4 = inlined_call_operand.hbm [shape: f32[4,1], index: 4, kind: input, shape index: {}]
  %s5 = inlined_call_operand.hbm [shape: f32[4,8], index: 5, kind: output, shape index: {}]
  %s6 = sld [smem:[#allocation0]]
  $region34: #{oracle_forward.1} parent=0
    _
  %s8 = ssub.s32 1, %s6
  %s9 = scalar_select 0, %s8, %s6
  $region1: #{oracle_forward.1} parent=0
    #allocation2 [shape = 'u8[2048]{0}', space=vmem, size = 0x800, scoped, tag = 'input window, operand 4, single buffered']
    #allocation3 [shape = 's32[1]{0}', space=sflag, size = 0x4, scoped, tag = 'scoped memory for oracle_forward.1']
    #allocation4 [shape = 's32[1]{0}', space=sflag, size = 0x4, scoped, tag = 'scoped memory for oracle_forward.1']
    #allocation5 [shape = 'u8[2048]{0}', space=vmem, size = 0x800, scoped, tag = 'output window, operand 0, single buffered']
    %10 = vsyncpa [#allocation3], 0
    %11 = vsyncpa [#allocation4], 0
    // Predicated region
    $region2: #{oracle_forward.1} parent=1 // pred_check
      _
    $region3: #{oracle_forward.1} parent=1 // pred_check_branch
      %13 = sbr.rel (0) target = $region5
    $region4: #{oracle_forward.1} parent=1 // pred_region
      _
    $region5: #{oracle_forward.1} parent=1 // pred_fallthru
      _
    // Predicated region
    $region6: #{oracle_forward.1} parent=1 // pred_check
      _
    $region7: #{oracle_forward.1} parent=1 // pred_check_branch
      %15 = sbr.rel (0) target = $region9
    $region8: #{oracle_forward.1} parent=1 // pred_region
      _
    $region9: #{oracle_forward.1} parent=1 // pred_fallthru
      _
    // Predicated region
    $region10: #{oracle_forward.1} parent=1 // pred_check
      _
    $region11: #{oracle_forward.1} parent=1 // pred_check_branch
      %17 = sbr.rel (0) target = $region13
    $region12: #{oracle_forward.1} parent=1 // pred_region
      _
    $region13: #{oracle_forward.1} parent=1 // pred_fallthru
      _
    // Predicated region
    $region14: #{oracle_forward.1} parent=1 // pred_check
      _
    $region15: #{oracle_forward.1} parent=1 // pred_check_branch
      %19 = sbr.rel (0) target = $region17
    $region16: #{oracle_forward.1} parent=1 // pred_region
      _
    $region17: #{oracle_forward.1} parent=1 // pred_fallthru
      _
    // Predicated region
    $region18: #{oracle_forward.1} parent=1 // pred_check
      _
    $region19: #{oracle_forward.1} parent=1 // pred_check_branch
      %21 = sbr.rel (0) target = $region21
    $region20: #{oracle_forward.1} parent=1 // pred_region
      %s23 = ssub.s32 64, 64
      %24 = vsyncadd [#allocation3], %s23
      %s26 = sshll.u32 [#allocation2], 4
      %s27 = int_to_ptr.vmem [resolvable:$true] %s26
      %29 = dma.hbm_to_vmem [thread:$0]  %s4, 64, %s27, [#allocation3]
    $region21: #{oracle_forward.1} parent=1 // pred_fallthru
      _
    // Predicated region
    $region22: #{oracle_forward.1} parent=1 // pred_check
      _
    $region23: #{oracle_forward.1} parent=1 // pred_check_branch
      %31 = sbr.rel (0) target = $region25
    $region24: #{oracle_forward.1} parent=1 // pred_region
      %32 = dma.done [#allocation3], 64
    $region25: #{oracle_forward.1} parent=1 // pred_fallthru
      _
    %v34 = vld [vmem:[%s0] sm:$0xf]
    %v35 = vld [vmem:[%s1] sm:$0xf]
    %v36 = vld [vmem:[%s1 + $0x4] sm:$0xf]
    %v37 = vld [vmem:[%s1 + $0x8] sm:$0xf]
    %v38 = vld [vmem:[%s1 + $0xc] sm:$0xf]
    %v39 = vld [vmem:[%s2] sm:$0x1]
    %v41 = vlaneseq
    %v42 = vshrl.u32 %v41, 7
    %v43 = vsub.s32 0, %v42
    %v44 = vrot.slane %v39, %v43
    %v50 = vunpack.c.l.b16 %v35
    %v51 = vunpack.c.l.b16 %v36
    %v52 = vunpack.c.l.b16 %v37
    %v53 = vunpack.c.l.b16 %v38
    %v54 = vpack.c.b16 %v51, %v50
    %v55 = vpack.c.b16 %v53, %v52
    %vm58 = vcmask 261120
    %v60 = vsel %vm58, %v34, 0
    %62 = vmatprep.subr.bf16.mxu0 0
    %63 = vmatpush1.bf16.msra.mxu0 0
    %64 = vmatprep.subr.bf16.mxu0 0
    %65 = vmatpush1.bf16.msra.mxu0 0
    %66 = vmatprep.subr.bf16.mxu0 0
    %67 = vmatpush1.bf16.msra.mxu0 0
    %68 = vmatprep.subr.bf16.mxu0 0
    %69 = vmatpush1.bf16.msra.mxu0 0
    %70 = vmatprep.subr.bf16.mxu0 0
    %71 = vmatpush1.bf16.msra.mxu0 0
    %72 = vmatprep.subr.bf16.mxu0 0
    %73 = vmatpush1.bf16.msra.mxu0 0
    %74 = vmatprep.subr.bf16.mxu0 0
    %75 = vmatpush1.bf16.msra.mxu0 %v55
    %76 = vmatprep.subr.bf16.mxu0 0
    %77 = vmatpush1.bf16.msra.mxu0 %v54
    %78 = vmatprep.subr.bf16.mxu0 0
    %79 = vmatpush2.bf16.msra.mxu0 0
    %80 = vmatprep.subr.bf16.mxu0 0
    %81 = vmatpush2.bf16.msra.mxu0 0
    %82 = vmatprep.subr.bf16.mxu0 0
    %83 = vmatpush2.bf16.msra.mxu0 0
    %84 = vmatprep.subr.bf16.mxu0 0
    %85 = vmatpush2.bf16.msra.mxu0 0
    %86 = vmatprep.subr.bf16.mxu0 0
    %87 = vmatpush2.bf16.msra.mxu0 0
    %88 = vmatprep.subr.bf16.mxu0 0
    %89 = vmatpush2.bf16.msra.mxu0 0
    %90 = vmatprep.subr.bf16.mxu0 0
    %91 = vmatpush2.bf16.msra.mxu0 0
    %92 = vmatprep.subr.bf16.mxu0 0
    %93 = vmatpush2.bf16.msra.mxu0 0
    %94 = vmatprep.mubr.bf16.mxu0 0
    %95 = vmatmul.mubr.bf16.gmra.mxu0 %v60
    %v96 = vpop.f32.mrf.mxu0
    %v97 = vadd.f32 %v44, %v96
    %v98 = vpop.f32.mrf.mxu0
    %v99 = vpop.f32.mrf.mxu0
    %v100 = vpop.f32.mrf.mxu0
    %101 = vdwg.mxu0
    %v102 = vmax.f32 %v97, 0.0
    %v103 = vpack.c.bf16 %v102, %v102
    %v104 = vld [vmem:[%s3] sm:$0x3]
    %v105 = vld [vmem:[#allocation2] sm:$0xf]
    %107 = vset.pattern.permute.xlu0 0
    %108 = vperm.xlu0 %107, %v105
    %v109 = vpop.permute.xlu0 %108
    %vm111 = vcmask 523264
    %v113 = vsel %vm111, %v104, 0
    %v116 = vsel %vm111, %v103, 0
    %118 = vmatprep.subr.bf16.mxu0 0
    %119 = vmatpush1.bf16.xpose.msra.mxu0 0
    %120 = vmatprep.subr.bf16.mxu0 0
    %121 = vmatpush1.bf16.xpose.msra.mxu0 0
    %122 = vmatprep.subr.bf16.mxu0 0
    %123 = vmatpush1.bf16.xpose.msra.mxu0 0
    %124 = vmatprep.subr.bf16.mxu0 0
    %125 = vmatpush1.bf16.xpose.msra.mxu0 0
    %126 = vmatprep.subr.bf16.mxu0 0
    %127 = vmatpush1.bf16.xpose.msra.mxu0 0
    %128 = vmatprep.subr.bf16.mxu0 0
    %129 = vmatpush1.bf16.xpose.msra.mxu0 0
    %130 = vmatprep.subr.bf16.mxu0 0
    %131 = vmatpush1.bf16.xpose.msra.mxu0 0
    %132 = vmatprep.subr.bf16.mxu0 0
    %133 = vmatpush1.bf16.xpose.msra.mxu0 %v116
    %134 = vmatprep.subr.bf16.mxu0 0
    %135 = vmatpush2.bf16.xpose.msra.mxu0 0
    %136 = vmatprep.subr.bf16.mxu0 0
    %137 = vmatpush2.bf16.xpose.msra.mxu0 0
    %138 = vmatprep.subr.bf16.mxu0 0
    %139 = vmatpush2.bf16.xpose.msra.mxu0 0
    %140 = vmatprep.subr.bf16.mxu0 0
    %141 = vmatpush2.bf16.xpose.msra.mxu0 0
    %142 = vmatprep.subr.bf16.mxu0 0
    %143 = vmatpush2.bf16.xpose.msra.mxu0 0
    %144 = vmatprep.subr.bf16.mxu0 0
    %145 = vmatpush2.bf16.xpose.msra.mxu0 0
    %146 = vmatprep.subr.bf16.mxu0 0
    %147 = vmatpush2.bf16.xpose.msra.mxu0 0
    %148 = vmatprep.subr.bf16.mxu0 0
    %149 = vmatpush2.bf16.xpose.msra.mxu0 0
    %150 = vmatprep.mubr.bf16.mxu0 0
    %151 = vmatmul.mubr.bf16.gmra.mxu0 %v113
    %v152 = vpop.f32.mrf.mxu0
    %v153 = vadd.f32 %v109, %v152
    %v154 = vpop.f32.mrf.mxu0
    %v155 = vpop.f32.mrf.mxu0
    %v156 = vpop.f32.mrf.mxu0
    %157 = vdwg.mxu0
    %vm158 = vcmask 60416
    %159 = vst.msk [vmem:[#allocation5] sm:$0xf] %vm158, %v153
    // Predicated region
    $region26: #{oracle_forward.1} parent=1 // pred_check
      _
    $region27: #{oracle_forward.1} parent=1 // pred_check_branch
      %161 = sbr.rel (0) target = $region29
    $region28: #{oracle_forward.1} parent=1 // pred_region
      %s163 = ssub.s32 64, 64
      %164 = vsyncadd [#allocation4], %s163
      %s166 = sshll.u32 [#allocation5], 4
      %s167 = int_to_ptr.vmem [resolvable:$true] %s166
      %169 = dma.vmem_to_hbm [thread:$0]  %s167, 64, %s5, [#allocation4]
    $region29: #{oracle_forward.1} parent=1 // pred_fallthru
      _
    // Predicated region
    $region30: #{oracle_forward.1} parent=1 // pred_check
      _
    $region31: #{oracle_forward.1} parent=1 // pred_check_branch
      %171 = sbr.rel (0) target = $region33
    $region32: #{oracle_forward.1} parent=1 // pred_region
      %172 = dma.done [#allocation4], 64
    $region33: #{oracle_forward.1} parent=1 // pred_fallthru
      _
    %173 = vsyncpa [#allocation3], 1
    %174 = vsyncpa [#allocation4], 1

</llo_original>
